<compile_context>
chip_gen: v6e
topology: v6e:2x2x1
jax: 0.10.0
libtpu: 0.0.40
codegen_flags: <defaults>
</compile_context>

<pallas_src>
import jax
import jax.numpy as jnp
from jax.experimental import pallas as pl
from jax.experimental.pallas import tpu as pltpu

# --- sizes implied by the module --------------------------------------------
SEG1_END = 2 * 13 * 4                                     # 104: keep state[..., :104]
SEG2_START = 4 * 13 * 4                                   # 208: keep state[..., 208:]
IN_FEATURES = 13 * 4 + 13 * 4 + 4 * 4 + 4 * 4 + 4 + 1     # 141
STATE_FEATURES = SEG2_START + (IN_FEATURES - SEG1_END)    # 245 raw input features
HIDDEN = 128
OUT_FEATURES = 52

TB_MAX = 2048     # per-step DMA >> 0.35us step overhead; sweep 4096 on v7x
MIN_TB = 8        # sublane granularity


def _round_up(n: int, m: int) -> int:
    return ((n + m - 1) // m) * m


def _cdiv(a: int, b: int) -> int:
    return (a + b - 1) // b


def _choose_tile(batch: int) -> int:
    """Balanced batch tile (multiple of 8), >=2 tiles when B allows (v7x dual-TC)."""
    n_tiles = _cdiv(batch, TB_MAX)
    if batch >= 2 * MIN_TB:
        n_tiles = max(n_tiles, 2)
    return _round_up(_cdiv(batch, n_tiles), MIN_TB)


def _qnet_kernel(x_ref, w1_ref, b1_ref, w2_ref, b2_ref, o_ref):
    """out = relu(x @ w1 + b1) @ w2 + b2 for one [TB, F] batch tile."""
    x = x_ref[...].astype(jnp.bfloat16)                                # [TB, F] bf16
    h = jnp.dot(x, w1_ref[...], preferred_element_type=jnp.float32)    # [TB, 128] f32
    h = jnp.maximum(h + b1_ref[...], 0.0)                              # f32 epilogue
    o = jnp.dot(h.astype(jnp.bfloat16), w2_ref[...],
                preferred_element_type=jnp.float32)                    # [TB, 52] f32
    o_ref[...] = o + b2_ref[...]


def qnet_pallas(x, w1p, b1p, w2p, b2p):
    """x: [B, F] f32 (F = 245 raw or 141 compact, must match w1p).  -> [B, 52] f32."""
    B, F = x.shape
    assert F == w1p.shape[0], (F, w1p.shape)

    TB = _choose_tile(B)
    grid = (_cdiv(B, TB),)     # ragged last block is fine: rows are independent

    flops = 2 * B * (F * HIDDEN + HIDDEN * OUT_FEATURES)
    bytes_accessed = (B * F * 4 + B * OUT_FEATURES * 4
                      + F * HIDDEN * 2 + HIDDEN * OUT_FEATURES * 2
                      + (HIDDEN + OUT_FEATURES) * 4)

    return pl.pallas_call(
        _qnet_kernel,
        out_shape=jax.ShapeDtypeStruct((B, OUT_FEATURES), jnp.float32),
        grid_spec=pltpu.PrefetchScalarGridSpec(
            num_scalar_prefetch=0,
            grid=grid,
            in_specs=[
                pl.BlockSpec((TB, F), lambda i: (i, 0)),                 # x tile (pipelined)
                pl.BlockSpec((F, HIDDEN), lambda i: (0, 0)),             # w1 (VMEM-resident)
                pl.BlockSpec((1, HIDDEN), lambda i: (0, 0)),             # b1
                pl.BlockSpec((HIDDEN, OUT_FEATURES), lambda i: (0, 0)),  # w2 (VMEM-resident)
                pl.BlockSpec((1, OUT_FEATURES), lambda i: (0, 0)),       # b2
            ],
            out_specs=pl.BlockSpec((TB, OUT_FEATURES), lambda i: (i, 0)),
        ),
        compiler_params=pltpu.CompilerParams(
            dimension_semantics=("parallel",)),
        cost_estimate=pl.CostEstimate(flops=flops, transcendentals=0,
                                      bytes_accessed=bytes_accessed),
    )(x, w1p, b1p, w2p, b2p)


def init_raw_params(key):
    """Deterministic init mimicking torch.nn.Linear default U[-1/sqrt(fan_in), +]."""
    k1, k2, k3, k4 = jax.random.split(key, 4)
    lim1 = 1.0 / (IN_FEATURES ** 0.5)
    lim2 = 1.0 / (HIDDEN ** 0.5)
    w1 = jax.random.uniform(k1, (IN_FEATURES, HIDDEN), jnp.float32, -lim1, lim1)
    b1 = jax.random.uniform(k2, (HIDDEN,), jnp.float32, -lim1, lim1)
    w2 = jax.random.uniform(k3, (HIDDEN, OUT_FEATURES), jnp.float32, -lim2, lim2)
    b2 = jax.random.uniform(k4, (OUT_FEATURES,), jnp.float32, -lim2, lim2)
    return w1, b1, w2, b2


def prepare_params(w1, b1, w2, b2):
    """Pack params for the raw [B, 245] state interface (module-exact).

    w1 [141,128] -> [245,128] bf16 with rows 104:208 zeroed: fuses the
    forward's cat(state[..., :104], state[..., 208:]) into the matmul.
    The 104 dead columns are still DMA'd; see prepare_params_compact for the
    preferred producer-side fix.
    """
    w1p = jnp.zeros((STATE_FEATURES, HIDDEN), jnp.float32)
    w1p = w1p.at[:SEG1_END, :].set(w1[:SEG1_END, :])
    w1p = w1p.at[SEG2_START:, :].set(w1[SEG1_END:, :])
    return (w1p.astype(jnp.bfloat16),
            b1.reshape(1, HIDDEN).astype(jnp.float32),
            w2.astype(jnp.bfloat16),
            b2.reshape(1, OUT_FEATURES).astype(jnp.float32))


def prepare_params_compact(w1, b1, w2, b2):
    """Pack params for producers that store the compacted [B, 141] state.

    Skips DMA of the 104 dead input columns (~28% of HBM traffic on the
    memory-bound kernel).  Use with state already laid out as
    cat(state[..., :104], state[..., 208:]).
    """
    return (w1.astype(jnp.bfloat16),
            b1.reshape(1, HIDDEN).astype(jnp.float32),
            w2.astype(jnp.bfloat16),
            b2.reshape(1, OUT_FEATURES).astype(jnp.float32))


@jax.jit
def tennis_leader_qnet_forward(state, packed_params):
    """Reproduces TennisLeaderQNetwork.forward.

    state[..., 245] with params from prepare_params, or state[..., 141]
    (pre-compacted) with params from prepare_params_compact.
    """
    w1p, b1p, w2p, b2p = packed_params
    lead = state.shape[:-1]
    x = state.reshape((-1, state.shape[-1])).astype(jnp.float32)
    q = qnet_pallas(x, w1p, b1p, w2p, b2p)
    return q.reshape(lead + (OUT_FEATURES,))


if __name__ == "__main__":
    key = jax.random.PRNGKey(0)
    pkey, xkey = jax.random.split(key)
    w1, b1, w2, b2 = init_raw_params(pkey)

    B = 2
    state = jax.random.normal(xkey, (B, STATE_FEATURES), jnp.float32)  # [2, 245]

    # Pure-JAX f32 reference of the module's forward (cat -> fc1 -> relu -> out).
    x_cat = jnp.concatenate([state[..., :SEG1_END], state[..., SEG2_START:]], axis=-1)
    ref = jnp.maximum(x_cat @ w1 + b1, 0.0) @ w2 + b2

    # 1) Module-exact raw-state path (concat fused via zero weight rows).
    out = tennis_leader_qnet_forward(state, prepare_params(w1, b1, w2, b2))
    out = jax.block_until_ready(out)
    assert out.shape == (B, OUT_FEATURES), out.shape
    err = float(jnp.max(jnp.abs(out - ref)))
    # bf16 matmul operands with f32 accumulation -> expected abs error O(5e-3).
    assert err < 5e-2, f"max abs err {err}"

    # 2) Compact-state path (preferred producer interface: no dead-column DMA).
    out_c = tennis_leader_qnet_forward(x_cat, prepare_params_compact(w1, b1, w2, b2))
    out_c = jax.block_until_ready(out_c)
    err_c = float(jnp.max(jnp.abs(out_c - ref)))
    assert err_c < 5e-2, f"max abs err (compact) {err_c}"

    print("KERNEL_OK")
</pallas_src>

<mosaic_0001>
module attributes {stable_mosaic.version = 11 : i64} {
  func.func @_qnet_kernel(%arg0: i32, %arg1: memref<8x245xf32, #tpu.memory_space<vmem>>, %arg2: memref<245x128xbf16, #tpu.memory_space<vmem>>, %arg3: memref<1x128xf32, #tpu.memory_space<vmem>>, %arg4: memref<128x52xbf16, #tpu.memory_space<vmem>>, %arg5: memref<1x52xf32, #tpu.memory_space<vmem>>, %arg6: memref<8x52xf32, #tpu.memory_space<vmem>>) attributes {dimension_semantics = [#tpu.dimension_semantics<parallel>], iteration_bounds = array<i64: 1>, scalar_prefetch = 0 : i64, scratch_operands = 0 : i64, tpu.core_type = #tpu.core_type<tc>, window_params = [{transform_indices = @transform_0, window_bounds = array<i64: 8, 245>}, {pipeline_mode = #tpu.pipeline_mode<synchronous>, transform_indices = @transform_1, window_bounds = array<i64: 245, 128>}, {pipeline_mode = #tpu.pipeline_mode<synchronous>, transform_indices = @transform_2, window_bounds = array<i64: 1, 128>}, {pipeline_mode = #tpu.pipeline_mode<synchronous>, transform_indices = @transform_3, window_bounds = array<i64: 128, 52>}, {pipeline_mode = #tpu.pipeline_mode<synchronous>, transform_indices = @transform_4, window_bounds = array<i64: 1, 52>}, {transform_indices = @transform_5, window_bounds = array<i64: 8, 52>}]} {
    %c0 = arith.constant 0 : index
    %c0_0 = arith.constant 0 : index
    %0 = vector.load %arg1[%c0, %c0_0] : memref<8x245xf32, #tpu.memory_space<vmem>>, vector<8x245xf32>
    %1 = arith.truncf %0 : vector<8x245xf32> to vector<8x245xbf16>
    %c0_1 = arith.constant 0 : index
    %c0_2 = arith.constant 0 : index
    %2 = vector.load %arg2[%c0_1, %c0_2] : memref<245x128xbf16, #tpu.memory_space<vmem>>, vector<245x128xbf16>
    %cst = arith.constant dense<0.000000e+00> : vector<8x128xf32>
    %3 = tpu.matmul %1, %2, %cst {dimension_numbers = #tpu.dot_dimension_numbers<[1], [0], [0], [1], [0, 0, 1, 1], [], []>} : vector<8x245xbf16>, vector<245x128xbf16>, vector<8x128xf32> -> vector<8x128xf32>
    %c0_3 = arith.constant 0 : index
    %c0_4 = arith.constant 0 : index
    %4 = vector.load %arg3[%c0_3, %c0_4] : memref<1x128xf32, #tpu.memory_space<vmem>>, vector<1x128xf32>
    %5 = vector.broadcast %4 : vector<1x128xf32> to vector<8x128xf32>
    %6 = arith.addf %3, %5 : vector<8x128xf32>
    %cst_5 = arith.constant 0.000000e+00 : f32
    %7 = vector.broadcast %cst_5 : f32 to vector<8x128xf32>
    %8 = arith.maximumf %6, %7 : vector<8x128xf32>
    %9 = arith.truncf %8 : vector<8x128xf32> to vector<8x128xbf16>
    %c0_6 = arith.constant 0 : index
    %c0_7 = arith.constant 0 : index
    %10 = vector.load %arg4[%c0_6, %c0_7] : memref<128x52xbf16, #tpu.memory_space<vmem>>, vector<128x52xbf16>
    %cst_8 = arith.constant dense<0.000000e+00> : vector<8x52xf32>
    %11 = tpu.matmul %9, %10, %cst_8 {dimension_numbers = #tpu.dot_dimension_numbers<[1], [0], [0], [1], [0, 0, 1, 1], [], []>} : vector<8x128xbf16>, vector<128x52xbf16>, vector<8x52xf32> -> vector<8x52xf32>
    %c0_9 = arith.constant 0 : index
    %c0_10 = arith.constant 0 : index
    %12 = vector.load %arg5[%c0_9, %c0_10] : memref<1x52xf32, #tpu.memory_space<vmem>>, vector<1x52xf32>
    %13 = vector.broadcast %12 : vector<1x52xf32> to vector<8x52xf32>
    %14 = arith.addf %11, %13 : vector<8x52xf32>
    %c0_11 = arith.constant 0 : index
    %c0_12 = arith.constant 0 : index
    %15 = vector.load %arg6[%c0_11, %c0_12] : memref<8x52xf32, #tpu.memory_space<vmem>>, vector<8x52xf32>
    tpu.vector_store %arg6[%c0_11, %c0_12], %14 {strides = array<i32>} : memref<8x52xf32, #tpu.memory_space<vmem>>, vector<8x52xf32>,
    return
  }
  func.func @transform_0(%arg0: i32) -> (i32, i32) {
    %c0_i32 = arith.constant 0 : i32
    %c0_i32_0 = arith.constant 0 : i32
    return %arg0, %c0_i32 : i32, i32
  }
  func.func @transform_1(%arg0: i32) -> (i32, i32) {
    %c0_i32 = arith.constant 0 : i32
    %c0_i32_0 = arith.constant 0 : i32
    %c0_i32_1 = arith.constant 0 : i32
    return %c0_i32, %c0_i32_0 : i32, i32
  }
  func.func @transform_2(%arg0: i32) -> (i32, i32) {
    %c0_i32 = arith.constant 0 : i32
    %c0_i32_0 = arith.constant 0 : i32
    %c0_i32_1 = arith.constant 0 : i32
    return %c0_i32, %c0_i32_0 : i32, i32
  }
  func.func @transform_3(%arg0: i32) -> (i32, i32) {
    %c0_i32 = arith.constant 0 : i32
    %c0_i32_0 = arith.constant 0 : i32
    %c0_i32_1 = arith.constant 0 : i32
    return %c0_i32, %c0_i32_0 : i32, i32
  }
  func.func @transform_4(%arg0: i32) -> (i32, i32) {
    %c0_i32 = arith.constant 0 : i32
    %c0_i32_0 = arith.constant 0 : i32
    %c0_i32_1 = arith.constant 0 : i32
    return %c0_i32, %c0_i32_0 : i32, i32
  }
  func.func @transform_5(%arg0: i32) -> (i32, i32) {
    %c0_i32 = arith.constant 0 : i32
    %c0_i32_0 = arith.constant 0 : i32
    return %arg0, %c0_i32 : i32, i32
  }
}

</mosaic_0001>

<llo_original>
// kernel: tennis_leader_qnet_forward.1
$region0: #{tennis_leader_qnet_forward.1}
  #allocation0 [shape = 'u32[]', space=smem, size = 0x4, offset = 0x4, fixed_abs, tag = 'smem constant byte address 0x4 - core index']
  #allocation1 [shape = 'u32[144,128]{1,0:T(1,128)}', space=vmem, size = 0x12000, scoped, tag = 'internal scratch']
  %s0 = inlined_call_operand.vmem [shape: f32[2,245], index: 0, kind: input, shape index: {}]
  %s1 = inlined_call_operand.hbm [shape: bf16[245,128], index: 1, kind: input, shape index: {}]
  %s2 = inlined_call_operand.vmem [shape: f32[1,128], index: 2, kind: input, shape index: {}]
  %s3 = inlined_call_operand.vmem [shape: bf16[128,52], index: 3, kind: input, shape index: {}]
  %s4 = inlined_call_operand.vmem [shape: f32[1,52], index: 4, kind: input, shape index: {}]
  %s5 = inlined_call_operand.hbm [shape: f32[2,52], index: 5, kind: output, shape index: {}]
  %s6 = sld [smem:[#allocation0]]
  $region34: #{tennis_leader_qnet_forward.1} parent=0
    _
  %s8 = ssub.s32 1, %s6
  %s9 = scalar_select 0, %s8, %s6
  $region1: #{tennis_leader_qnet_forward.1} parent=0
    #allocation2 [shape = 'u8[63488]{0}', space=vmem, size = 0xf800, scoped, tag = 'input window, operand 1, single buffered']
    #allocation3 [shape = 's32[1]{0}', space=sflag, size = 0x4, scoped, tag = 'scoped memory for tennis_leader_qnet_forward.1']
    #allocation4 [shape = 's32[1]{0}', space=sflag, size = 0x4, scoped, tag = 'scoped memory for tennis_leader_qnet_forward.1']
    #allocation5 [shape = 'u8[4096]{0}', space=vmem, size = 0x1000, scoped, tag = 'output window, operand 0, single buffered']
    %10 = vsyncpa [#allocation3], 0
    %11 = vsyncpa [#allocation4], 0
    // Predicated region
    $region2: #{tennis_leader_qnet_forward.1} parent=1 // pred_check
      _
    $region3: #{tennis_leader_qnet_forward.1} parent=1 // pred_check_branch
      %13 = sbr.rel (0) target = $region5
    $region4: #{tennis_leader_qnet_forward.1} parent=1 // pred_region
      _
    $region5: #{tennis_leader_qnet_forward.1} parent=1 // pred_fallthru
      _
    // Predicated region
    $region6: #{tennis_leader_qnet_forward.1} parent=1 // pred_check
      _
    $region7: #{tennis_leader_qnet_forward.1} parent=1 // pred_check_branch
      %15 = sbr.rel (0) target = $region9
    $region8: #{tennis_leader_qnet_forward.1} parent=1 // pred_region
      %s17 = ssub.s32 1984, 1984
      %18 = vsyncadd [#allocation3], %s17
      %s19 = sshll.u32 [#allocation2], 4
      %s20 = int_to_ptr.vmem [resolvable:$true] %s19
      %25 = dma.hbm_to_vmem [thread:$0]  %s1, 1984, %s20, [#allocation3], 64, 64, 4
    $region9: #{tennis_leader_qnet_forward.1} parent=1 // pred_fallthru
      _
    // Predicated region
    $region10: #{tennis_leader_qnet_forward.1} parent=1 // pred_check
      _
    $region11: #{tennis_leader_qnet_forward.1} parent=1 // pred_check_branch
      %27 = sbr.rel (0) target = $region13
    $region12: #{tennis_leader_qnet_forward.1} parent=1 // pred_region
      _
    $region13: #{tennis_leader_qnet_forward.1} parent=1 // pred_fallthru
      _
    // Predicated region
    $region14: #{tennis_leader_qnet_forward.1} parent=1 // pred_check
      _
    $region15: #{tennis_leader_qnet_forward.1} parent=1 // pred_check_branch
      %29 = sbr.rel (0) target = $region17
    $region16: #{tennis_leader_qnet_forward.1} parent=1 // pred_region
      _
    $region17: #{tennis_leader_qnet_forward.1} parent=1 // pred_fallthru
      _
    // Predicated region
    $region18: #{tennis_leader_qnet_forward.1} parent=1 // pred_check
      _
    $region19: #{tennis_leader_qnet_forward.1} parent=1 // pred_check_branch
      %31 = sbr.rel (0) target = $region21
    $region20: #{tennis_leader_qnet_forward.1} parent=1 // pred_region
      _
    $region21: #{tennis_leader_qnet_forward.1} parent=1 // pred_fallthru
      _
    // Predicated region
    $region22: #{tennis_leader_qnet_forward.1} parent=1 // pred_check
      _
    $region23: #{tennis_leader_qnet_forward.1} parent=1 // pred_check_branch
      %33 = sbr.rel (0) target = $region25
    $region24: #{tennis_leader_qnet_forward.1} parent=1 // pred_region
      %34 = dma.done [#allocation3], 1984
    $region25: #{tennis_leader_qnet_forward.1} parent=1 // pred_fallthru
      _
    %v36 = vld [vmem:[%s0] sm:$0xf]
    %v37 = vld [vmem:[%s0 + $0x4] sm:$0xf]
    %v38 = vld [vmem:[%s0 + $0x8] sm:$0xf]
    %v39 = vld [vmem:[%s0 + $0xc] sm:$0xf]
    %v44 = vcombine.low %v36, %v37
    %v45 = vcombine.low %v38, %v39
    %v47 = vunpack.c.l.s4 1983009808
    %v48 = vunpack.c.0.s8 %v47
    %v49 = vlaneseq
    %v50 = vshrl.u32 %v49, 7
    %v51 = vsub.s32 %v48, %v50
    %v52 = vrot.slane %v44, %v51
    %v54 = vunpack.c.l.s4 1983009808
    %v55 = vunpack.c.0.s8 %v54
    %v56 = vlaneseq
    %v57 = vshrl.u32 %v56, 7
    %v58 = vsub.s32 %v55, %v57
    %v59 = vrot.slane %v45, %v58
    %v60 = vcombine.low %v52, %v59
    %v61 = vcombine.high %v52, %v59
    %v64 = vpack.c.bf16 %v60, %v60
    %v65 = vpack.c.bf16 %v61, %v61
    %v66 = vld [vmem:[#allocation2] sm:$0xf]
    %v67 = vld [vmem:[#allocation2 + $0x4] sm:$0xf]
    %v68 = vld [vmem:[#allocation2 + $0x8] sm:$0xf]
    %v69 = vld [vmem:[#allocation2 + $0xc] sm:$0xf]
    %v70 = vld [vmem:[#allocation2 + $0x10] sm:$0xf]
    %v71 = vld [vmem:[#allocation2 + $0x14] sm:$0xf]
    %v72 = vld [vmem:[#allocation2 + $0x18] sm:$0xf]
    %v73 = vld [vmem:[#allocation2 + $0x1c] sm:$0xf]
    %v74 = vld [vmem:[#allocation2 + $0x20] sm:$0xf]
    %v75 = vld [vmem:[#allocation2 + $0x24] sm:$0xf]
    %v76 = vld [vmem:[#allocation2 + $0x28] sm:$0xf]
    %v77 = vld [vmem:[#allocation2 + $0x2c] sm:$0xf]
    %v78 = vld [vmem:[#allocation2 + $0x30] sm:$0xf]
    %v79 = vld [vmem:[#allocation2 + $0x34] sm:$0xf]
    %v80 = vld [vmem:[#allocation2 + $0x38] sm:$0xf]
    %v81 = vld [vmem:[#allocation2 + $0x3c] sm:$0xf]
    %v82 = vld [vmem:[#allocation2 + $0x40] sm:$0xf]
    %v83 = vld [vmem:[#allocation2 + $0x44] sm:$0xf]
    %v84 = vld [vmem:[#allocation2 + $0x48] sm:$0xf]
    %v85 = vld [vmem:[#allocation2 + $0x4c] sm:$0xf]
    %v86 = vld [vmem:[#allocation2 + $0x50] sm:$0xf]
    %v87 = vld [vmem:[#allocation2 + $0x54] sm:$0xf]
    %v88 = vld [vmem:[#allocation2 + $0x58] sm:$0xf]
    %v89 = vld [vmem:[#allocation2 + $0x5c] sm:$0xf]
    %v90 = vld [vmem:[#allocation2 + $0x60] sm:$0xf]
    %v91 = vld [vmem:[#allocation2 + $0x64] sm:$0xf]
    %v92 = vld [vmem:[#allocation2 + $0x68] sm:$0xf]
    %v93 = vld [vmem:[#allocation2 + $0x6c] sm:$0xf]
    %v94 = vld [vmem:[#allocation2 + $0x70] sm:$0xf]
    %v95 = vld [vmem:[#allocation2 + $0x74] sm:$0xf]
    %v96 = vld [vmem:[#allocation2 + $0x78] sm:$0x7]
    %v97 = vld [vmem:[%s2] sm:$0x1]
    %v99 = vlaneseq
    %v100 = vshrl.u32 %v99, 7
    %v101 = vsub.s32 0, %v100
    %v102 = vrot.slane %v97, %v101
    %v135 = vunpack.c.l.b16 %v66
    %v136 = vunpack.c.l.b16 %v67
    %v137 = vunpack.c.l.b16 %v68
    %v138 = vunpack.c.l.b16 %v69
    %v139 = vunpack.c.l.b16 %v70
    %v140 = vunpack.c.l.b16 %v71
    %v141 = vunpack.c.l.b16 %v72
    %v142 = vunpack.c.l.b16 %v73
    %v143 = vunpack.c.l.b16 %v74
    %v144 = vunpack.c.l.b16 %v75
    %v145 = vunpack.c.l.b16 %v76
    %v146 = vunpack.c.l.b16 %v77
    %v147 = vunpack.c.l.b16 %v78
    %v148 = vunpack.c.l.b16 %v79
    %v149 = vunpack.c.l.b16 %v80
    %v150 = vunpack.c.l.b16 %v81
    %v151 = vunpack.c.l.b16 %v82
    %v152 = vunpack.c.l.b16 %v83
    %v153 = vunpack.c.l.b16 %v84
    %v154 = vunpack.c.l.b16 %v85
    %v155 = vunpack.c.l.b16 %v86
    %v156 = vunpack.c.l.b16 %v87
    %v157 = vunpack.c.l.b16 %v88
    %v158 = vunpack.c.l.b16 %v89
    %v159 = vunpack.c.l.b16 %v90
    %v160 = vunpack.c.l.b16 %v91
    %v161 = vunpack.c.l.b16 %v92
    %v162 = vunpack.c.l.b16 %v93
    %v163 = vunpack.c.l.b16 %v94
    %v164 = vunpack.c.l.b16 %v95
    %v165 = vunpack.c.l.b16 %v96
    %v166 = vpack.c.b16 %v136, %v135
    %v167 = vpack.c.b16 %v138, %v137
    %v168 = vpack.c.b16 %v140, %v139
    %v169 = vpack.c.b16 %v142, %v141
    %v170 = vpack.c.b16 %v144, %v143
    %v171 = vpack.c.b16 %v146, %v145
    %v172 = vpack.c.b16 %v148, %v147
    %v173 = vpack.c.b16 %v150, %v149
    %v174 = vpack.c.b16 %v152, %v151
    %v175 = vpack.c.b16 %v154, %v153
    %v176 = vpack.c.b16 %v156, %v155
    %v177 = vpack.c.b16 %v158, %v157
    %v178 = vpack.c.b16 %v160, %v159
    %v179 = vpack.c.b16 %v162, %v161
    %v180 = vpack.c.b16 %v164, %v163
    %v181 = vpack.c.b16 %v165, %v165
    %vm197 = vcmask 957440
    %v199 = vsel %vm197, %v65, 0
    %vm201 = vcmask 1041408
    %vm202 = vcmask 1042432
    %v203 = vsel %vm201, 4294967295, 65535
    %v204 = vsel %vm202, %v203, 0
    %v206 = vand.u32 %v181, %v204
    %208 = vmatprep.subr.bf16.mxu0 0
    %209 = vmatpush1.bf16.msra.mxu0 %v173
    %210 = vmatprep.subr.bf16.mxu0 0
    %211 = vmatpush1.bf16.msra.mxu0 %v172
    %212 = vmatprep.subr.bf16.mxu0 0
    %213 = vmatpush1.bf16.msra.mxu0 %v171
    %214 = vmatprep.subr.bf16.mxu0 0
    %215 = vmatpush1.bf16.msra.mxu0 %v170
    %216 = vmatprep.subr.bf16.mxu0 0
    %217 = vmatpush1.bf16.msra.mxu0 %v169
    %218 = vmatprep.subr.bf16.mxu0 0
    %219 = vmatpush1.bf16.msra.mxu0 %v168
    %220 = vmatprep.subr.bf16.mxu0 0
    %221 = vmatpush1.bf16.msra.mxu0 %v167
    %222 = vmatprep.subr.bf16.mxu0 0
    %223 = vmatpush1.bf16.msra.mxu0 %v166
    %224 = vmatprep.subr.bf16.mxu0 0
    %225 = vmatpush2.bf16.msra.mxu0 %v206
    %226 = vmatprep.subr.bf16.mxu0 0
    %227 = vmatpush2.bf16.msra.mxu0 %v180
    %228 = vmatprep.subr.bf16.mxu0 0
    %229 = vmatpush2.bf16.msra.mxu0 %v179
    %230 = vmatprep.subr.bf16.mxu0 0
    %231 = vmatpush2.bf16.msra.mxu0 %v178
    %232 = vmatprep.subr.bf16.mxu0 0
    %233 = vmatpush2.bf16.msra.mxu0 %v177
    %234 = vmatprep.subr.bf16.mxu0 0
    %235 = vmatpush2.bf16.msra.mxu0 %v176
    %236 = vmatprep.subr.bf16.mxu0 0
    %237 = vmatpush2.bf16.msra.mxu0 %v175
    %238 = vmatprep.subr.bf16.mxu0 0
    %239 = vmatpush2.bf16.msra.mxu0 %v174
    %240 = vmatprep.mubr.bf16.mxu0 %v199
    %241 = vmatmul.mubr.bf16.gmra.mxu0 %v64
    %v242 = vpop.f32.mrf.mxu0
    %v243 = vadd.f32 %v102, %v242
    %v244 = vpop.f32.mrf.mxu0
    %v245 = vpop.f32.mrf.mxu0
    %v246 = vpop.f32.mrf.mxu0
    %247 = vdwg.mxu0
    %v248 = vmax.f32 %v243, 0.0
    %v249 = vpack.c.bf16 %v248, %v248
    %v250 = vld [vmem:[%s3] sm:$0xf]
    %v251 = vld [vmem:[%s3 + $0x4] sm:$0xf]
    %v252 = vld [vmem:[%s3 + $0x8] sm:$0xf]
    %v253 = vld [vmem:[%s3 + $0xc] sm:$0xf]
    %v254 = vld [vmem:[%s3 + $0x10] sm:$0xf]
    %v255 = vld [vmem:[%s3 + $0x14] sm:$0xf]
    %v256 = vld [vmem:[%s3 + $0x18] sm:$0xf]
    %v257 = vld [vmem:[%s3 + $0x1c] sm:$0xf]
    %v258 = vld [vmem:[%s3 + $0x20] sm:$0xf]
    %v259 = vld [vmem:[%s3 + $0x24] sm:$0xf]
    %v260 = vld [vmem:[%s3 + $0x28] sm:$0xf]
    %v261 = vld [vmem:[%s3 + $0x2c] sm:$0xf]
    %v262 = vld [vmem:[%s3 + $0x30] sm:$0xf]
    %v263 = vld [vmem:[%s3 + $0x34] sm:$0xf]
    %v264 = vld [vmem:[%s3 + $0x38] sm:$0xf]
    %v265 = vld [vmem:[%s3 + $0x3c] sm:$0xf]
    %v266 = vld [vmem:[%s4] sm:$0x1]
    %v268 = vlaneseq
    %v269 = vshrl.u32 %v268, 7
    %v270 = vsub.s32 0, %v269
    %v271 = vrot.slane %v266, %v270
    %v289 = vunpack.c.l.b16 %v250
    %v290 = vunpack.c.l.b16 %v251
    %v291 = vunpack.c.l.b16 %v252
    %v292 = vunpack.c.l.b16 %v253
    %v293 = vunpack.c.l.b16 %v254
    %v294 = vunpack.c.l.b16 %v255
    %v295 = vunpack.c.l.b16 %v256
    %v296 = vunpack.c.l.b16 %v257
    %v297 = vunpack.c.l.b16 %v258
    %v298 = vunpack.c.l.b16 %v259
    %v299 = vunpack.c.l.b16 %v260
    %v300 = vunpack.c.l.b16 %v261
    %v301 = vunpack.c.l.b16 %v262
    %v302 = vunpack.c.l.b16 %v263
    %v303 = vunpack.c.l.b16 %v264
    %v304 = vunpack.c.l.b16 %v265
    %v305 = vpack.c.b16 %v290, %v289
    %v306 = vpack.c.b16 %v292, %v291
    %v307 = vpack.c.b16 %v294, %v293
    %v308 = vpack.c.b16 %v296, %v295
    %v309 = vpack.c.b16 %v298, %v297
    %v310 = vpack.c.b16 %v300, %v299
    %v311 = vpack.c.b16 %v302, %v301
    %v312 = vpack.c.b16 %v304, %v303
    %321 = vmatprep.subr.bf16.mxu0 0
    %322 = vmatpush1.bf16.msra.mxu0 %v312
    %323 = vmatprep.subr.bf16.mxu0 0
    %324 = vmatpush1.bf16.msra.mxu0 %v311
    %325 = vmatprep.subr.bf16.mxu0 0
    %326 = vmatpush1.bf16.msra.mxu0 %v310
    %327 = vmatprep.subr.bf16.mxu0 0
    %328 = vmatpush1.bf16.msra.mxu0 %v309
    %329 = vmatprep.subr.bf16.mxu0 0
    %330 = vmatpush1.bf16.msra.mxu0 %v308
    %331 = vmatprep.subr.bf16.mxu0 0
    %332 = vmatpush1.bf16.msra.mxu0 %v307
    %333 = vmatprep.subr.bf16.mxu0 0
    %334 = vmatpush1.bf16.msra.mxu0 %v306
    %335 = vmatprep.subr.bf16.mxu0 0
    %336 = vmatpush1.bf16.msra.mxu0 %v305
    %337 = vmatprep.subr.bf16.mxu0 0
    %338 = vmatpush2.bf16.msra.mxu0 0
    %339 = vmatprep.subr.bf16.mxu0 0
    %340 = vmatpush2.bf16.msra.mxu0 0
    %341 = vmatprep.subr.bf16.mxu0 0
    %342 = vmatpush2.bf16.msra.mxu0 0
    %343 = vmatprep.subr.bf16.mxu0 0
    %344 = vmatpush2.bf16.msra.mxu0 0
    %345 = vmatprep.subr.bf16.mxu0 0
    %346 = vmatpush2.bf16.msra.mxu0 0
    %347 = vmatprep.subr.bf16.mxu0 0
    %348 = vmatpush2.bf16.msra.mxu0 0
    %349 = vmatprep.subr.bf16.mxu0 0
    %350 = vmatpush2.bf16.msra.mxu0 0
    %351 = vmatprep.subr.bf16.mxu0 0
    %352 = vmatpush2.bf16.msra.mxu0 0
    %353 = vmatprep.mubr.bf16.mxu0 0
    %354 = vmatmul.mubr.bf16.gmra.mxu0 %v249
    %v355 = vpop.f32.mrf.mxu0
    %v356 = vadd.f32 %v271, %v355
    %v357 = vpop.f32.mrf.mxu0
    %v358 = vpop.f32.mrf.mxu0
    %v359 = vpop.f32.mrf.mxu0
    %360 = vdwg.mxu0
    %vm361 = vcmask 424960
    %362 = vst.msk [vmem:[#allocation5] sm:$0xff] %vm361, %v356
    // Predicated region
    $region26: #{tennis_leader_qnet_forward.1} parent=1 // pred_check
      _
    $region27: #{tennis_leader_qnet_forward.1} parent=1 // pred_check_branch
      %364 = sbr.rel (0) target = $region29
    $region28: #{tennis_leader_qnet_forward.1} parent=1 // pred_region
      %s366 = ssub.s32 128, 32
      %367 = vsyncadd [#allocation4], %s366
      %s368 = sshll.u32 [#allocation5], 4
      %s369 = int_to_ptr.vmem [resolvable:$true] %s368
      %374 = dma.vmem_to_hbm [thread:$0]  %s369, 32, %s5, [#allocation4], 32, 32, 2
    $region29: #{tennis_leader_qnet_forward.1} parent=1 // pred_fallthru
      _
    // Predicated region
    $region30: #{tennis_leader_qnet_forward.1} parent=1 // pred_check
      _
    $region31: #{tennis_leader_qnet_forward.1} parent=1 // pred_check_branch
      %376 = sbr.rel (0) target = $region33
    $region32: #{tennis_leader_qnet_forward.1} parent=1 // pred_region
      %377 = dma.done [#allocation4], 128
    $region33: #{tennis_leader_qnet_forward.1} parent=1 // pred_fallthru
      _
    %378 = vsyncpa [#allocation3], 1
    %379 = vsyncpa [#allocation4], 1

</llo_original>
